<compile_context>
chip_gen: v6e
topology: v6e:2x2x1
jax: 0.10.0
libtpu: 0.0.40
codegen_flags: <defaults>
</compile_context>

<pallas_src>
import jax
import jax.numpy as jnp
from jax import lax
from jax.experimental import pallas as pl
from jax.experimental.pallas import tpu as pltpu

LN_EPS = 1e-5  # torch.nn.LayerNorm default


def _cdiv(a, b):
    return -(-a // b)


# ----------------------------------------------------------------------------
# Hardware introspection (best-effort; safe fallbacks)
# ----------------------------------------------------------------------------
def _vmem_limits():
    """Returns (vmem_limit_bytes to request, byte budget used for tile sizing)."""
    phys = 64 * 1024 * 1024  # conservative fallback (v7x per-TC VMEM)
    try:
        phys = int(pltpu.get_tpu_info().vmem_capacity_bytes)
    except Exception:
        pass
    limit = min((phys * 3) // 4, 96 * 1024 * 1024)   # explicit scoped-VMEM limit
    budget = (limit * 3) // 4                        # headroom for Pallas internals
    return limit, budget


def _num_tensorcores():
    """Best-effort TensorCore-per-chip count (v7x megacore); defaults to 1."""
    try:
        info = pltpu.get_tpu_info()
        for name in ("num_cores", "core_count", "num_tensorcores", "tensorcore_count"):
            v = getattr(info, name, None)
            if v:
                return max(1, int(v))
    except Exception:
        pass
    try:
        return max(1, int(getattr(jax.devices()[0], "num_cores", 1)))
    except Exception:
        return 1


# ----------------------------------------------------------------------------
# Pallas kernels: per-layer LayerNorm * (softmax(w)[l]*gamma[l]), accumulated
# over the layer (reduction) grid axis; sum_l softmax(w)[l]*beta[l] added once.
# ----------------------------------------------------------------------------
def _ln_contrib(x_ref, gb_ref, layer):
    """LayerNorm(x) * (softmax(w)[layer] * gamma[layer]), in f32.

    x_ref  : (tm, H)     hidden-state tile of layer `layer`
    gb_ref : (L+1, H)    rows 0..L-1 = weight-folded gammas, row L = beta_sum
    """
    x = x_ref[...].astype(jnp.float32)                      # (tm, H)
    mu = jnp.mean(x, axis=-1, keepdims=True)                # (tm, 1)
    msq = jnp.mean(x * x, axis=-1, keepdims=True)           # (tm, 1) -- same x pass
    var = jnp.maximum(msq - mu * mu, 0.0)                   # clamp cancellation
    g = gb_ref[pl.ds(layer, 1), :]                          # (1, H)
    return (x - mu) * (lax.rsqrt(var + LN_EPS) * g)


def _wls_kernel_f32_out(x_ref, gb_ref, o_ref):
    """f32 output: accumulate directly into the resident output tile."""
    layer = pl.program_id(1)
    contrib = _ln_contrib(x_ref, gb_ref, layer)
    beta_row = gb_ref.shape[0] - 1  # static

    @pl.when(layer == 0)
    def _first():
        # direct store (no zero-init pass) + fold-in of the precomputed beta sum
        o_ref[...] = contrib + gb_ref[pl.ds(beta_row, 1), :]

    @pl.when(layer > 0)
    def _rest():
        o_ref[...] += contrib


def _wls_kernel_scratch(x_ref, gb_ref, o_ref, acc_ref):
    """non-f32 output: accumulate in f32 scratch, cast once on last layer."""
    layer = pl.program_id(1)
    contrib = _ln_contrib(x_ref, gb_ref, layer)
    beta_row = gb_ref.shape[0] - 1  # static

    @pl.when(layer == 0)
    def _first():
        acc_ref[...] = contrib + gb_ref[pl.ds(beta_row, 1), :]

    @pl.when(layer > 0)
    def _rest():
        acc_ref[...] += contrib

    @pl.when(layer == pl.num_programs(1) - 1)
    def _finalize():
        o_ref[...] = acc_ref[...].astype(o_ref.dtype)


# ----------------------------------------------------------------------------
# Tile-size selection (HBM-bound kernel -> biggest tile that fits VMEM budget)
# ----------------------------------------------------------------------------
def _choose_tm(M, H, x_dtype, out_dtype, *, vmem_budget_bytes, num_cores):
    """Pick the row-tile size.

    - as large as possible (fixed per-grid-step overhead dominates small tiles
      on this memory-bound kernel): target 1024 rows for f32 input, 2048 for
      sub-32-bit (bf16) input,
    - aligned to the sublane packing of the input dtype (8 f32 / 16 bf16),
    - capped so double-buffered input + double-buffered output + f32 scratch
      + in-kernel f32 temporaries stay under the generation-aware VMEM budget,
    - on multi-TensorCore chips (v7x), kept small enough that the parallel row
      axis has >= 2 steps per core (preserves input double-buffering on both
      cores); single-TC chips (v5e/v6e) skip this cap,
    - tiny / ragged M (M <= tile) uses one full-extent block (no alignment
      requirement since the block equals the array dim).
    """
    xb = jnp.dtype(x_dtype).itemsize
    ob = jnp.dtype(out_dtype).itemsize
    pack = max(8, (4 // xb) * 8)
    acc_bytes = 0 if jnp.dtype(out_dtype) == jnp.float32 else 4
    temp_bytes = 12                        # ~3 live (tm, H) f32 temporaries in-kernel
    per_row = H * (2 * xb + 2 * ob + acc_bytes + temp_bytes)
    tm_target = 2048 if xb < 4 else 1024
    tm = min(tm_target, max(pack, vmem_budget_bytes // max(per_row, 1)))
    tm = max(pack, (tm // pack) * pack)
    if M <= tm:
        return M                            # single full block (handles ragged/tiny M)
    if num_cores > 1:
        min_steps = 2 * num_cores
        if M >= min_steps * pack:
            tm = min(tm, max(pack, (_cdiv(M, min_steps) // pack) * pack))
    return tm


# ----------------------------------------------------------------------------
# Wrapper: LayerNorm-per-layer + softmax-weighted layer sum
# ----------------------------------------------------------------------------
def weighted_layer_sum(hidden_states, ln_gamma, ln_beta, layer_weights, *,
                       tm=None, out_dtype=None):
    """hidden_states: (L, B, T, H) -> (B, T, H)."""
    L, B, T, H = hidden_states.shape
    M = B * T
    out_dtype = jnp.dtype(out_dtype or hidden_states.dtype)

    x = hidden_states.reshape(L, M, H)

    # Tiny L-vector softmax; fold the per-layer weight into gamma, and fold the
    # whole beta term out of the layer loop (added once in-kernel at layer 0).
    w = jax.nn.softmax(layer_weights.astype(jnp.float32)).reshape(L, 1)
    g = ln_gamma.astype(jnp.float32).reshape(L, H) * w                       # (L, H)
    beta_sum = jnp.sum(ln_beta.astype(jnp.float32).reshape(L, H) * w,
                       axis=0, keepdims=True)                                # (1, H)
    gb = jnp.concatenate([g, beta_sum], axis=0)                              # (L+1, H)

    vmem_limit, vmem_budget = _vmem_limits()
    if tm is None:
        tm = _choose_tm(M, H, x.dtype, out_dtype,
                        vmem_budget_bytes=vmem_budget,
                        num_cores=_num_tensorcores())

    grid = (_cdiv(M, tm), L)   # no jnp.pad: the last row tile may be partial
    in_specs = [
        # x tile of layer l; the layer dim is squeezed away in the kernel.
        pl.BlockSpec((pl.Squeezed(), tm, H), lambda m, l: (l, m, 0)),
        # packed (folded-gamma rows + beta_sum row): constant index_map ->
        # DMA'd once, resident in VMEM, indexed by program_id(1) in-kernel.
        pl.BlockSpec((L + 1, H), lambda m, l: (0, 0)),
    ]
    out_spec = pl.BlockSpec((tm, H), lambda m, l: (m, 0))

    if out_dtype == jnp.float32:
        kernel = _wls_kernel_f32_out
        scratch = []
    else:
        kernel = _wls_kernel_scratch
        scratch = [pltpu.VMEM((tm, H), jnp.float32)]

    out = pl.pallas_call(
        kernel,
        out_shape=jax.ShapeDtypeStruct((M, H), out_dtype),
        grid_spec=pltpu.PrefetchScalarGridSpec(
            num_scalar_prefetch=0,
            grid=grid,
            in_specs=in_specs,
            out_specs=out_spec,
            scratch_shapes=scratch,
        ),
        compiler_params=pltpu.CompilerParams(
            dimension_semantics=("parallel", "arbitrary"),
            vmem_limit_bytes=vmem_limit),
    )(x, gb)

    return out.reshape(B, T, H)


# ----------------------------------------------------------------------------
# Deterministic stand-in for the Wav2Vec2 backbone (plain-JAX glue).
# ----------------------------------------------------------------------------
def stub_wav2vec2_hidden_states(input_values, proj_weights, frame):
    """input_values: (B, C, S) channels-first (PyTorch convention).
    Returns stacked hidden states (L, B, T, H) with T = S // frame."""
    B, C, S = input_values.shape
    L, F, H = proj_weights.shape
    assert F == C * frame and S % frame == 0
    T = S // frame
    frames = (input_values.reshape(B, C, T, frame)
              .transpose(0, 2, 1, 3)
              .reshape(B, T, F))
    return jnp.einsum("btf,lfh->lbth", frames, proj_weights)


# ----------------------------------------------------------------------------
# Module-equivalent wrapper
# ----------------------------------------------------------------------------
def get_wav2vec2_hidden_states(params, config, input_values, *,
                               compute_dtype=None, tm=None):
    """Mirrors BaseMultiDimWav2Vec2ForDownstreamTasks.get_wav2vec2_hidden_states."""
    hs = stub_wav2vec2_hidden_states(
        input_values, params["proj_weights"], config["frame"])
    if compute_dtype is not None:
        hs = hs.astype(compute_dtype)
    if config["use_weighted_layer_sum"]:
        return weighted_layer_sum(
            hs, params["ln_gamma"], params["ln_beta"], params["layer_weights"],
            tm=tm)
    # use_weighted_layer_sum == False -> outputs.last_hidden_state
    return hs[-1]


# pure-JAX reference (for numerical sanity only)
def _layer_sum_reference(hs, params):
    hs = hs.astype(jnp.float32)
    mu = jnp.mean(hs, axis=-1, keepdims=True)
    var = jnp.mean(jnp.square(hs - mu), axis=-1, keepdims=True)
    xhat = (hs - mu) / jnp.sqrt(var + LN_EPS)
    ln = (xhat * params["ln_gamma"][:, None, None, :]
          + params["ln_beta"][:, None, None, :])
    w = jax.nn.softmax(params["layer_weights"].astype(jnp.float32))
    return jnp.sum(ln * w[:, None, None, None], axis=0)


if __name__ == "__main__":
    # small config consistent with the module
    # NOTE: real wav2vec2 uses H in {768, 1024} (lane-dense multiples of 128);
    # the tiny H=32 here still works because the block spans the full H dim.
    config = dict(
        hidden_size=32,
        num_hidden_layers=3,       # -> num_layers = 4 hidden states
        use_weighted_layer_sum=True,
        num_input_channels=3,
        frame=8,
    )
    L = config["num_hidden_layers"] + 1
    H = config["hidden_size"]
    B, C, S = 2, config["num_input_channels"], 64
    F = C * config["frame"]

    key = jax.random.PRNGKey(0)
    k_in, k_proj, k_g, k_b = jax.random.split(key, 4)

    input_values = jax.random.normal(k_in, (B, C, S), dtype=jnp.float32)

    params = dict(
        # as in __init__: torch.ones(num_layers) / num_layers
        layer_weights=jnp.ones((L,), jnp.float32) / L,
        # nn.LayerNorm default is gamma=1, beta=0; perturb deterministically
        # so the kernel's affine path is exercised.
        ln_gamma=1.0 + 0.1 * jax.random.normal(k_g, (L, H), jnp.float32),
        ln_beta=0.1 * jax.random.normal(k_b, (L, H), jnp.float32),
        # stand-in backbone projection weights
        proj_weights=jax.random.normal(k_proj, (L, F, H), jnp.float32) / jnp.sqrt(F),
    )

    # ---- f32 path (direct-into-output accumulation kernel variant) ----------
    out = get_wav2vec2_hidden_states(params, config, input_values)
    out = jax.block_until_ready(out)

    hs_f32 = stub_wav2vec2_hidden_states(
        input_values, params["proj_weights"], config["frame"])
    ref = _layer_sum_reference(hs_f32, params)
    assert out.shape == (B, S // config["frame"], H)
    assert jnp.allclose(out, ref, atol=2e-5, rtol=1e-5), "f32 mismatch vs reference"

    # ---- bf16 path (halved HBM traffic; f32-scratch kernel variant) ---------
    out_bf16 = get_wav2vec2_hidden_states(
        params, config, input_values, compute_dtype=jnp.bfloat16)
    out_bf16 = jax.block_until_ready(out_bf16)
    ref_bf16 = _layer_sum_reference(hs_f32.astype(jnp.bfloat16), params)
    assert out_bf16.dtype == jnp.bfloat16
    assert out_bf16.shape == (B, S // config["frame"], H)
    assert jnp.allclose(out_bf16.astype(jnp.float32), ref_bf16,
                        atol=5e-2, rtol=5e-2), "bf16 mismatch vs reference"

    # ---- ragged-M path (no jnp.pad; partial last row tile via boundary block)
    S_rag = 56                                      # T = 7 -> M = 14, tm = 8
    input_rag = jax.random.normal(
        jax.random.PRNGKey(1), (B, C, S_rag), dtype=jnp.float32)
    out_rag = get_wav2vec2_hidden_states(params, config, input_rag, tm=8)
    out_rag = jax.block_until_ready(out_rag)
    hs_rag = stub_wav2vec2_hidden_states(
        input_rag, params["proj_weights"], config["frame"])
    ref_rag = _layer_sum_reference(hs_rag, params)
    assert out_rag.shape == (B, S_rag // config["frame"], H)
    assert jnp.allclose(out_rag, ref_rag, atol=2e-5, rtol=1e-5), \
        "ragged-M mismatch vs reference"

    print("KERNEL_OK")
</pallas_src>

<mosaic_0001>
module attributes {stable_mosaic.version = 11 : i64} {
  func.func @_wls_kernel_f32_out(%arg0: i32, %arg1: i32, %arg2: memref<1x16x32xf32, #tpu.memory_space<vmem>>, %arg3: memref<5x32xf32, #tpu.memory_space<vmem>>, %arg4: memref<16x32xf32, #tpu.memory_space<vmem>>) attributes {dimension_semantics = [#tpu.dimension_semantics<parallel>, #tpu.dimension_semantics<arbitrary>], iteration_bounds = array<i64: 1, 4>, scalar_prefetch = 0 : i64, scratch_operands = 0 : i64, tpu.core_type = #tpu.core_type<tc>, window_params = [{transform_indices = @transform_0, window_bounds = array<i64: 1, 16, 32>}, {pipeline_mode = #tpu.pipeline_mode<synchronous>, transform_indices = @transform_1, window_bounds = array<i64: 5, 32>}, {transform_indices = @transform_2, window_bounds = array<i64: 16, 32>}]} {
    %c0 = arith.constant 0 : index
    %c0_0 = arith.constant 0 : index
    %c0_1 = arith.constant 0 : index
    %0 = vector.load %arg2[%c0, %c0_0, %c0_1] : memref<1x16x32xf32, #tpu.memory_space<vmem>>, vector<1x16x32xf32>
    %1 = vector.shape_cast %0 : vector<1x16x32xf32> to vector<16x32xf32>
    %cst = arith.constant dense<0.000000e+00> : vector<16xf32>
    %2 = vector.multi_reduction <add>, %1, %cst [1] : vector<16x32xf32> to vector<16xf32>
    %3 = vector.shape_cast %2 : vector<16xf32> to vector<16x1xf32>
    %cst_2 = arith.constant 3.200000e+01 : f32
    %4 = vector.broadcast %cst_2 : f32 to vector<16x1xf32>
    %5 = arith.divf %3, %4 : vector<16x1xf32>
    %6 = arith.mulf %1, %1 : vector<16x32xf32>
    %cst_3 = arith.constant dense<0.000000e+00> : vector<16xf32>
    %7 = vector.multi_reduction <add>, %6, %cst_3 [1] : vector<16x32xf32> to vector<16xf32>
    %8 = vector.shape_cast %7 : vector<16xf32> to vector<16x1xf32>
    %cst_4 = arith.constant 3.200000e+01 : f32
    %9 = vector.broadcast %cst_4 : f32 to vector<16x1xf32>
    %10 = arith.divf %8, %9 : vector<16x1xf32>
    %11 = arith.mulf %5, %5 : vector<16x1xf32>
    %12 = arith.subf %10, %11 : vector<16x1xf32>
    %cst_5 = arith.constant 0.000000e+00 : f32
    %13 = vector.broadcast %cst_5 : f32 to vector<16x1xf32>
    %14 = arith.maximumf %12, %13 : vector<16x1xf32>
    %15 = arith.index_cast %arg1 : i32 to index
    %c0_6 = arith.constant 0 : index
    %16 = vector.load %arg3[%15, %c0_6] : memref<5x32xf32, #tpu.memory_space<vmem>>, vector<1x32xf32>
    %17 = vector.broadcast %5 : vector<16x1xf32> to vector<16x32xf32>
    %18 = arith.subf %1, %17 : vector<16x32xf32>
    %cst_7 = arith.constant 9.99999974E-6 : f32
    %19 = vector.broadcast %cst_7 : f32 to vector<16x1xf32>
    %20 = arith.addf %14, %19 : vector<16x1xf32>
    %21 = math.rsqrt %20 : vector<16x1xf32>
    %22 = vector.broadcast %21 : vector<16x1xf32> to vector<16x32xf32>
    %23 = vector.broadcast %16 : vector<1x32xf32> to vector<16x32xf32>
    %24 = arith.mulf %22, %23 : vector<16x32xf32>
    %25 = arith.mulf %18, %24 : vector<16x32xf32>
    %c0_i32 = arith.constant 0 : i32
    %26 = arith.cmpi eq, %arg1, %c0_i32 : i32
    %27 = arith.extui %26 : i1 to i32
    %c0_i32_8 = arith.constant 0 : i32
    %28 = arith.cmpi ne, %27, %c0_i32_8 : i32
    scf.if %28 {
      %c4 = arith.constant 4 : index
      %c0_11 = arith.constant 0 : index
      %32 = vector.load %arg3[%c4, %c0_11] : memref<5x32xf32, #tpu.memory_space<vmem>>, vector<1x32xf32>
      %33 = vector.broadcast %32 : vector<1x32xf32> to vector<16x32xf32>
      %34 = arith.addf %25, %33 : vector<16x32xf32>
      %c0_12 = arith.constant 0 : index
      %c0_13 = arith.constant 0 : index
      %35 = vector.load %arg4[%c0_12, %c0_13] : memref<16x32xf32, #tpu.memory_space<vmem>>, vector<16x32xf32>
      tpu.vector_store %arg4[%c0_12, %c0_13], %34 {strides = array<i32>} : memref<16x32xf32, #tpu.memory_space<vmem>>, vector<16x32xf32>,
    } else {
    }
    %c0_i32_9 = arith.constant 0 : i32
    %29 = arith.cmpi sgt, %arg1, %c0_i32_9 : i32
    %30 = arith.extui %29 : i1 to i32
    %c0_i32_10 = arith.constant 0 : i32
    %31 = arith.cmpi ne, %30, %c0_i32_10 : i32
    scf.if %31 {
      %c0_11 = arith.constant 0 : index
      %c0_12 = arith.constant 0 : index
      %32 = vector.load %arg4[%c0_11, %c0_12] : memref<16x32xf32, #tpu.memory_space<vmem>>, vector<16x32xf32>
      %33 = arith.addf %32, %25 : vector<16x32xf32>
      %c0_13 = arith.constant 0 : index
      %c0_14 = arith.constant 0 : index
      %34 = vector.load %arg4[%c0_13, %c0_14] : memref<16x32xf32, #tpu.memory_space<vmem>>, vector<16x32xf32>
      tpu.vector_store %arg4[%c0_13, %c0_14], %33 {strides = array<i32>} : memref<16x32xf32, #tpu.memory_space<vmem>>, vector<16x32xf32>,
    } else {
    }
    return
  }
  func.func @transform_0(%arg0: i32, %arg1: i32) -> (i32, i32, i32) {
    %c0_i32 = arith.constant 0 : i32
    %c0_i32_0 = arith.constant 0 : i32
    return %arg1, %arg0, %c0_i32 : i32, i32, i32
  }
  func.func @transform_1(%arg0: i32, %arg1: i32) -> (i32, i32) {
    %c0_i32 = arith.constant 0 : i32
    %c0_i32_0 = arith.constant 0 : i32
    %c0_i32_1 = arith.constant 0 : i32
    return %c0_i32, %c0_i32_0 : i32, i32
  }
  func.func @transform_2(%arg0: i32, %arg1: i32) -> (i32, i32) {
    %c0_i32 = arith.constant 0 : i32
    %c0_i32_0 = arith.constant 0 : i32
    return %arg0, %c0_i32 : i32, i32
  }
}

</mosaic_0001>

<llo_original>
// kernel: tpu_custom_call.1
$region0: #{tpu_custom_call.1}
  #allocation0 [shape = 'u32[]', space=smem, size = 0x4, offset = 0x4, fixed_abs, tag = 'smem constant byte address 0x4 - core index']
  #allocation1 [shape = 'u32[144,128]{1,0:T(1,128)}', space=vmem, size = 0x12000, scoped, tag = 'internal scratch']
  %s0 = inlined_call_operand.hbm [shape: f32[4,16,32], index: 0, kind: input, shape index: {}]
  %s1 = inlined_call_operand.hbm [shape: f32[5,32], index: 1, kind: input, shape index: {}]
  %s2 = inlined_call_operand.hbm [shape: f32[16,32], index: 2, kind: output, shape index: {}]
  %s3 = sld [smem:[#allocation0]]
  $region57: #{tpu_custom_call.1} parent=0
    _
  %s5 = ssub.s32 1, %s3
  %s6 = scalar_select 0, %s5, %s3
  $region1: #{tpu_custom_call.1} parent=0
    #allocation2 [shape = 'u8[16384]{0}', space=vmem, size = 0x4000, scoped, tag = 'input window, operand 0']
    #allocation3 [shape = 's32[2]{0}', space=sflag, size = 0x8, scoped, tag = 'scoped memory for tpu_custom_call.1']
    #allocation4 [shape = 's32[2]{0}', space=sflag, size = 0x8, scoped, tag = 'scoped memory for tpu_custom_call.1']
    #allocation5 [shape = 'u8[4096]{0}', space=vmem, size = 0x1000, scoped, tag = 'input window, operand 1, single buffered']
    #allocation6 [shape = 's32[1]{0}', space=sflag, size = 0x4, scoped, tag = 'scoped memory for tpu_custom_call.1']
    #allocation7 [shape = 'u8[8192]{0}', space=vmem, size = 0x2000, scoped, tag = 'output window, operand 0, single buffered']
    %7 = vsyncpa [#allocation3], 0
    %s8 = scalar_lea.sflag [#allocation3], 1
    %9 = vsyncpa %s8, 0
    %10 = vsyncpa [#allocation6], 0
    %11 = vsyncpa [#allocation4], 0
    loop: start=0, step=1, limit=6
    $region2: #{tpu_custom_call.1} parent=1 // loop_pre_header
      _
    $region3: #{tpu_custom_call.1} parent=1 // loop_header
      %s13 = sphi 0, %s17
      %p14 = scmp.ge.s32.totalorder %s13, 6
      %s20 = sphi 0, %s32
      %s21 = sphi 0, %s28
      %s22 = sphi 0, %s20
      %s23 = sphi 0, %s21
      %s24 = sphi 0, %s22
      %s25 = sphi 0, %s23
      %s37 = sphi 0, %s39
      %s40 = sphi 0, %s37
      %s41 = sphi 0, %s40
      %s57 = sphi 0, %s41
      %s61 = sphi 0, %s61
      %s63 = sphi 0, %s61
      %s64 = sphi 0, %s63
      %s78 = sphi 0, %s64
      %s84 = sphi 0, %s86
      %s87 = sphi 0, %s84
      %s88 = sphi 0, %s87
      %s104 = sphi 0, %s88
    $region4: #{tpu_custom_call.1} parent=1 // loop_header_branch
      %16 = sbr.rel (%p14) target = $region8
    $region5: #{tpu_custom_call.1} parent=1 // loop_body
      %s18 = ssub.s32 %s13, 1
      %s19 = ssub.s32 %s13, 2
      %s26 = sadd.s32 1, %s21
      %p27 = scmp.ge.s32.totalorder %s26, 4
      %s28 = scalar_select %p27, 0, %s26
      %s29 = sadd.s32 1, %s20
      %s30 = scalar_select %p27, %s29, %s20
      %p31 = scmp.ge.s32.totalorder %s30, 1
      %s32 = scalar_select %p31, 0, %s30
      %s33 = ssub.s32 %s21, %s28
      %s34 = ssub.s32 %s20, %s32
      %s35 = sor.u32 %s33, %s34
      %p36 = scmp.eq.s32.totalorder %s35, 0
      %s38 = sadd.s32 %s37, 1
      %s39 = scalar_select %p36, %s37, %s38
      %p42 = pneg %p36
      %p43 = scmp.eq.s32.totalorder %s13, 3
      %p44 = por %p42, %p43
      %p45 = scmp.ne.s32.totalorder %s37, %s40
      %p46 = scmp.eq.s32.totalorder %s13, 0
      %p47 = por %p45, %p46
      %p48 = scmp.ne.s32.totalorder %s37, %s40
      %p49 = scmp.eq.s32.totalorder %s18, 3
      %p50 = por %p48, %p49
      %p51 = scmp.ne.s32.totalorder %s40, %s41
      %p52 = scmp.eq.s32.totalorder %s18, 0
      %p53 = por %p51, %p52
      %p54 = scmp.ne.s32.totalorder %s40, %s41
      %p55 = scmp.eq.s32.totalorder %s19, 3
      %p56 = por %p54, %p55
      %p58 = scmp.ne.s32.totalorder %s41, %s57
      %p59 = scmp.eq.s32.totalorder %s19, 0
      %p60 = por %p58, %p59
      %s62 = sadd.s32 %s61, 1
      %p65 = scmp.eq.s32.totalorder %s13, 3
      %p66 = scmp.ne.s32.totalorder %s61, %s63
      %p67 = scmp.eq.s32.totalorder %s13, 0
      %p68 = por %p66, %p67
      %p69 = scmp.ne.s32.totalorder %s61, %s63
      %p70 = scmp.eq.s32.totalorder %s18, 3
      %p71 = por %p69, %p70
      %p72 = scmp.ne.s32.totalorder %s63, %s64
      %p73 = scmp.eq.s32.totalorder %s18, 0
      %p74 = por %p72, %p73
      %p75 = scmp.ne.s32.totalorder %s63, %s64
      %p76 = scmp.eq.s32.totalorder %s19, 3
      %p77 = por %p75, %p76
      %p79 = scmp.ne.s32.totalorder %s64, %s78
      %p80 = scmp.eq.s32.totalorder %s19, 0
      %p81 = por %p79, %p80
      %s82 = ssub.s32 %s20, %s32
      %p83 = scmp.eq.s32.totalorder %s82, 0
      %s85 = sadd.s32 %s84, 1
      %s86 = scalar_select %p83, %s84, %s85
      %p89 = pneg %p83
      %p90 = scmp.eq.s32.totalorder %s13, 3
      %p91 = por %p89, %p90
      %p92 = scmp.ne.s32.totalorder %s84, %s87
      %p93 = scmp.eq.s32.totalorder %s13, 0
      %p94 = por %p92, %p93
      %p95 = scmp.ne.s32.totalorder %s84, %s87
      %p96 = scmp.eq.s32.totalorder %s18, 3
      %p97 = por %p95, %p96
      %p98 = scmp.ne.s32.totalorder %s87, %s88
      %p99 = scmp.eq.s32.totalorder %s18, 0
      %p100 = por %p98, %p99
      %p101 = scmp.ne.s32.totalorder %s87, %s88
      %p102 = scmp.eq.s32.totalorder %s19, 3
      %p103 = por %p101, %p102
      %p105 = scmp.ne.s32.totalorder %s88, %s104
      %p106 = scmp.eq.s32.totalorder %s19, 0
      %p107 = por %p105, %p106
      %p108 = scmp.le.s32.totalorder 1, %s13
      %p109 = scmp.lt.s32.totalorder %s13, 5
      %p110 = pnand %p108, %p109
      %p111 = pneg %p110
      // Predicated region
      $region9: #{tpu_custom_call.1} parent=5 // pred_check
        _
      $region10: #{tpu_custom_call.1} parent=5 // pred_check_branch
        %113 = sbr.rel (%p110) target = $region12
      $region11: #{tpu_custom_call.1} parent=5 // pred_region
        %s114 = ssub.s32 %s13, 1
        // Predicated region
        $region13: #{tpu_custom_call.1} parent=11 // pred_check
          %p115 = pneg %p74
        $region14: #{tpu_custom_call.1} parent=11 // pred_check_branch
          %117 = sbr.rel (%p115) target = $region16
        $region15: #{tpu_custom_call.1} parent=11 // pred_region
          %s119 = ssub.s32 128, 128
          %120 = vsyncadd [#allocation6], %s119
          %s122 = sshll.u32 [#allocation5], 4
          %s123 = int_to_ptr.vmem [resolvable:$true] %s122
          %125 = dma.hbm_to_vmem [thread:$0]  %s1, 128, %s123, [#allocation6]
        $region16: #{tpu_custom_call.1} parent=11 // pred_fallthru
          _
      $region12: #{tpu_custom_call.1} parent=5 // pred_fallthru
        _
      %p126 = scmp.lt.s32.totalorder %s13, 4
      // Predicated region
      $region17: #{tpu_custom_call.1} parent=5 // pred_check
        %p127 = pneg %p126
      $region18: #{tpu_custom_call.1} parent=5 // pred_check_branch
        %129 = sbr.rel (%p127) target = $region20
      $region19: #{tpu_custom_call.1} parent=5 // pred_region
        // Predicated region
        $region21: #{tpu_custom_call.1} parent=19 // pred_check
          %p130 = pneg %p47
        $region22: #{tpu_custom_call.1} parent=19 // pred_check_branch
          %132 = sbr.rel (%p130) target = $region24
        $region23: #{tpu_custom_call.1} parent=19 // pred_region
          %s133 = sand.u32 %s37, 1
          %s134 = scalar_lea.sflag [#allocation3], %s133
          %s135 = sand.u32 %s37, 1
          %s136 = smul.addr %s135, 16
          %s137 = scalar_lea.vmem [#allocation2], %s136
          %s138 = smul.u32 2, %s20
          %s140 = ssub.s32 256, 256
          %141 = vsyncadd %s134, %s140
          %s142 = smul.addr %s21, 2
          %s143 = sadd.s32 %s138, %s142
          %s144 = smul.addr %s143, 128
          %s145 = scalar_lea.hbm %s0, %s144
          %s146 = sshll.u32 %s137, 4
          %s147 = int_to_ptr.vmem [resolvable:$true] %s146
          %152 = dma.hbm_to_vmem [thread:$0]  %s145, 256, %s147, %s134, 128, 128, 8
        $region24: #{tpu_custom_call.1} parent=19 // pred_fallthru
          _
      $region20: #{tpu_custom_call.1} parent=5 // pred_fallthru
        _
      %p153 = scmp.le.s32.totalorder 1, %s13
      %p154 = scmp.lt.s32.totalorder %s13, 5
      %p155 = pnand %p153, %p154
      %p156 = pneg %p155
      // Predicated region
      $region25: #{tpu_custom_call.1} parent=5 // pred_check
        _
      $region26: #{tpu_custom_call.1} parent=5 // pred_check_branch
        %158 = sbr.rel (%p155) target = $region28
      $region27: #{tpu_custom_call.1} parent=5 // pred_region
        %s159 = ssub.s32 %s13, 1
        %s160 = sand.u32 %s40, 1
        %s161 = scalar_lea.sflag [#allocation3], %s160
        %s162 = sand.u32 %s40, 1
        %s163 = smul.addr %s162, 16
        %s164 = scalar_lea.vmem [#allocation2], %s163
        // Predicated region
        $region29: #{tpu_custom_call.1} parent=27 // pred_check
          %p165 = pneg %p53
        $region30: #{tpu_custom_call.1} parent=27 // pred_check_branch
          %167 = sbr.rel (%p165) target = $region32
        $region31: #{tpu_custom_call.1} parent=27 // pred_region
          %168 = dma.done %s161, 256
        $region32: #{tpu_custom_call.1} parent=27 // pred_fallthru
          _
        // Predicated region
        $region33: #{tpu_custom_call.1} parent=27 // pred_check
          %p169 = pneg %p74
        $region34: #{tpu_custom_call.1} parent=27 // pred_check_branch
          %171 = sbr.rel (%p169) target = $region36
        $region35: #{tpu_custom_call.1} parent=27 // pred_region
          %172 = dma.done [#allocation6], 128
        $region36: #{tpu_custom_call.1} parent=27 // pred_fallthru
          _
        %s173 = sand.u32 %s40, 1
        %s174 = scalar_lea.sflag [#allocation3], %s173
        %s175 = sand.u32 %s40, 1
        %s176 = smul.addr %s175, 16
        %s177 = scalar_lea.vmem [#allocation2], %s176
        %p178 = pneg %p53
        %p179 = pneg %p50
        %p180 = pneg %p74
        %p181 = pneg %p71
        %p182 = pneg %p100
        %p183 = pneg %p97
        %s184 = smul.u32 2, %s22
        %s185 = smul.u32 2, %s22
        %v186 = vld [vmem:[%s164] sm:$0xff]
        %v187 = vld [vmem:[%s164 + $0x8] sm:$0xff]
        %vm188 = vcmask 261120
        %v189 = vsel %vm188, %v186, 0.0
        %190 = vadd.xlane.f32.xlu0 %v189
        %v191 = vpop.xlane.xlu0 %190
        %v192 = vsel %vm188, %v187, 0.0
        %193 = vadd.xlane.f32.xlu0 %v192
        %v194 = vpop.xlane.xlu0 %193
        %v195 = vrcp.pop 32.0
        %v196 = vmul.f32 %v191, %v195
        %v197 = vmul.f32 %v194, %v195
        %v198 = vmul.f32 %v186, %v186
        %v199 = vmul.f32 %v187, %v187
        %v200 = vsel %vm188, %v198, 0.0
        %201 = vadd.xlane.f32.xlu0 %v200
        %v202 = vpop.xlane.xlu0 %201
        %v203 = vsel %vm188, %v199, 0.0
        %204 = vadd.xlane.f32.xlu0 %v203
        %v205 = vpop.xlane.xlu0 %204
        %v206 = vmul.f32 %v202, %v195
        %v207 = vmul.f32 %v205, %v195
        %v208 = vmul.f32 %v196, %v196
        %v209 = vmul.f32 %v197, %v197
        %v210 = vsub.f32 %v206, %v208
        %v211 = vsub.f32 %v207, %v209
        %v212 = vmax.f32 %v210, 0.0
        %v213 = vmax.f32 %v211, 0.0
        %s214 = scalar_lea.vmem [#allocation5], %s23
        %v215 = vld [vmem:[%s214] sm:$0x1]
        %v216 = vsub.f32 %v186, %v196
        %v217 = vsub.f32 %v187, %v197
        %v218 = vadd.f32 %v212, 1e-05
        %v219 = vadd.f32 %v213, 1e-05
        %v220 = vrsqrt.pop %v218
        %v221 = vrsqrt.pop %v219
        %v222 = vlaneseq
        %v223 = vshrl.u32 %v222, 7
        %v224 = vsub.s32 0, %v223
        %v225 = vrot.slane %v215, %v224
        %v226 = vmul.f32 %v220, %v225
        %v227 = vmul.f32 %v221, %v225
        %v228 = vmul.f32 %v216, %v226
        %v229 = vmul.f32 %v217, %v227
        %p230 = scmp.eq.s32.totalorder %s23, 0
        // Predicated region
        $region37: #{tpu_custom_call.1} parent=27 // pred_check
          %p231 = pneg %p230
        $region38: #{tpu_custom_call.1} parent=27 // pred_check_branch
          %233 = sbr.rel (%p231) target = $region40
        $region39: #{tpu_custom_call.1} parent=27 // pred_region
          %v234 = vld [vmem:[#allocation5 + $0x4] sm:$0x1]
          %v235 = vlaneseq
          %v236 = vshrl.u32 %v235, 7
          %v237 = vsub.s32 0, %v236
          %v238 = vrot.slane %v234, %v237
          %v239 = vadd.f32 %v228, %v238
          %v240 = vadd.f32 %v229, %v238
          %241 = vst.msk [vmem:[#allocation7] sm:$0xff] %vm188, %v239
          %242 = vst.msk [vmem:[#allocation7 + $0x8] sm:$0xff] %vm188, %v240
        $region40: #{tpu_custom_call.1} parent=27 // pred_fallthru
          _
        %p243 = scmp.gt.s32.totalorder %s23, 0
        // Predicated region
        $region41: #{tpu_custom_call.1} parent=27 // pred_check
          %p244 = pneg %p243
        $region42: #{tpu_custom_call.1} parent=27 // pred_check_branch
          %246 = sbr.rel (%p244) target = $region44
        $region43: #{tpu_custom_call.1} parent=27 // pred_region
          %v247 = vld [vmem:[#allocation7] sm:$0xff]
          %v248 = vld [vmem:[#allocation7 + $0x8] sm:$0xff]
          %v249 = vadd.f32 %v247, %v228
          %v250 = vadd.f32 %v248, %v229
          %251 = vst.msk [vmem:[#allocation7] sm:$0xff] %vm188, %v249
          %252 = vst.msk [vmem:[#allocation7 + $0x8] sm:$0xff] %vm188, %v250
        $region44: #{tpu_custom_call.1} parent=27 // pred_fallthru
          _
        // Predicated region
        $region45: #{tpu_custom_call.1} parent=27 // pred_check
          %p253 = pneg %p97
        $region46: #{tpu_custom_call.1} parent=27 // pred_check_branch
          %255 = sbr.rel (%p253) target = $region48
        $region47: #{tpu_custom_call.1} parent=27 // pred_region
          %s256 = smul.u32 2, %s22
          %s258 = ssub.s32 256, 256
          %259 = vsyncadd [#allocation4], %s258
          %s260 = smul.addr %s256, 128
          %s261 = scalar_lea.hbm %s2, %s260
          %s262 = sshll.u32 [#allocation7], 4
          %s263 = int_to_ptr.vmem [resolvable:$true] %s262
          %268 = dma.vmem_to_hbm [thread:$0]  %s263, 256, %s261, [#allocation4], 128, 128, 8
        $region48: #{tpu_custom_call.1} parent=27 // pred_fallthru
          _
        // Predicated region
        $region49: #{tpu_custom_call.1} parent=27 // pred_check
          %p269 = pneg %p97
        $region50: #{tpu_custom_call.1} parent=27 // pred_check_branch
          %271 = sbr.rel (%p269) target = $region52
        $region51: #{tpu_custom_call.1} parent=27 // pred_region
          %272 = dma.done [#allocation4], 256
        $region52: #{tpu_custom_call.1} parent=27 // pred_fallthru
          _
      $region28: #{tpu_custom_call.1} parent=5 // pred_fallthru
        _
      %p273 = scmp.le.s32.totalorder 2, %s13
      // Predicated region
      $region53: #{tpu_custom_call.1} parent=5 // pred_check
        %p274 = pneg %p273
      $region54: #{tpu_custom_call.1} parent=5 // pred_check_branch
        %276 = sbr.rel (%p274) target = $region56
      $region55: #{tpu_custom_call.1} parent=5 // pred_region
        %s277 = ssub.s32 %s13, 2
      $region56: #{tpu_custom_call.1} parent=5 // pred_fallthru
        _
    $region6: #{tpu_custom_call.1} parent=1 // loop_footer
      %s17 = sadd.s32 1, %s13
    $region7: #{tpu_custom_call.1} parent=1 // loop_footer_branch
      %12 = sbr.rel target = $region3
    $region8: #{tpu_custom_call.1} parent=1 // loop_exit
      _
    %278 = vsyncpa [#allocation3], 1
    %s279 = scalar_lea.sflag [#allocation3], 1
    %280 = vsyncpa %s279, 1
    %281 = vsyncpa [#allocation6], 1
    %282 = vsyncpa [#allocation4], 1
    %s283 = scalar_lea.sflag [#allocation4], 1
    %284 = vsyncpa %s283, 1

</llo_original>
